<compile_context>
chip_gen: v7x
topology: tpu7x:2x2x1
jax: 0.10.0
libtpu: 0.0.40
codegen_flags: <defaults>
</compile_context>

<pallas_src>
import functools
import math

import jax
import jax.numpy as jnp
from jax import lax
from jax.experimental import pallas as pl
from jax.experimental.pallas import tpu as pltpu

_LANE = 128
_SUBLANE = 8
_TILE_BYTES = 2 * 1024 * 1024     # per-operand block target (v6e/v7x sweet spot)
_VMEM_LIMIT = 32 * 1024 * 1024    # explicit scoped-VMEM limit (v5e default is 16 MiB)


def _masked_mse_kernel(im1_ref, im2_ref, mask_ref, li_ref, num_ref, den_ref,
                       *, cols, tc, ragged):
    """One (tr, tc) tile: loss_image store + per-row masked-SSE / mask-sum slabs."""
    j = pl.program_id(1)

    @pl.when(j == 0)
    def _():
        num_ref[...] = jnp.zeros_like(num_ref)
        den_ref[...] = jnp.zeros_like(den_ref)

    d = im1_ref[...].astype(jnp.float32) - im2_ref[...].astype(jnp.float32)
    m = mask_ref[...].astype(jnp.float32)

    if ragged:
        # The last column block sticks out past the real per-row length; zero
        # those lanes so stale VMEM contents cannot pollute num/den.
        # (loss_image writes past the array bound are dropped by Pallas.)
        lane = lax.broadcasted_iota(jnp.int32, d.shape, 1)
        valid = lane < (cols - j * tc)
        d = jnp.where(valid, d, 0.0)
        m = jnp.where(valid, m, 0.0)

    li = d * d * m                        # MSELoss(reduction='none') * mask
    li_ref[...] = li.astype(li_ref.dtype)

    # Fold tc lanes down to a 128-lane slab with a static halving tree of
    # lane-aligned adds (pure VPU work; no XLU reduce, no sub-128-lane store).
    def fold(x):
        w = x.shape[1]
        while w > _LANE:
            w //= 2
            x = x[:, :w] + x[:, w:]
        return x

    num_ref[...] += fold(li)
    den_ref[...] += fold(m)


def _layout(b, n, min_itemsize, max_itemsize):
    """Pick (k, rows, cols, tr, tc, nr, nc, ragged) with no host-side padding."""
    # Sublane tile: fill packed vregs for narrow dtypes (8/f32, 16/bf16, 32/int8).
    tr = _SUBLANE * max(1, 4 // max(1, min_itemsize))

    # Fold factor k: view (b, n) as (b*k, n//k) (free contiguous reshape) so the
    # sublanes are filled and the parallel row axis gets extent >= 2 (megacore
    # sharding on multi-TC chips).  Requires k | n.
    k0 = tr // math.gcd(b, tr)            # smallest k with (b*k) % tr == 0
    k = 1
    cand = k0
    while cand <= 64:
        if n % cand == 0 and (n // cand) >= _LANE:
            k = cand
            if (b * cand) // tr >= 2:      # at least 2 row blocks
                break
        cand *= 2
    rows, cols = b * k, n // k
    if rows < tr:
        tr = rows                          # full-dim row block for tiny batches

    # Column tile: 128 * 2^p (needed by the halving tree), ~2 MiB per operand,
    # never much wider than the actual row length.  Last block may be partial
    # (handled by in-kernel masking; the DMA is clamped so no extra HBM bytes).
    budget_tc = max(_LANE, _TILE_BYTES // (tr * max_itemsize))
    cover = _LANE
    while cover < cols:
        cover *= 2
    tc = _LANE
    while tc * 2 <= min(budget_tc, cover):
        tc *= 2

    nr = pl.cdiv(rows, tr)
    nc = pl.cdiv(cols, tc)
    ragged = (cols % tc) != 0
    return k, rows, cols, tr, tc, nr, nc, ragged


def _calc_loss_fwd(im1, im2, mask):
    assert im1.shape == im2.shape == mask.shape
    orig_shape = im1.shape
    b = orig_shape[0]
    n = int(math.prod(orig_shape[1:]))

    mask = lax.stop_gradient(mask)        # mask.detach()

    out_dtype = jnp.result_type(im1.dtype, im2.dtype, mask.dtype)
    in_sizes = [jnp.dtype(x.dtype).itemsize for x in (im1, im2, mask)]
    out_size = jnp.dtype(out_dtype).itemsize
    k, rows, cols, tr, tc, nr, nc, ragged = _layout(
        b, n, min(in_sizes + [out_size]), max(in_sizes + [out_size]))

    # Free, contiguous reshapes -- no padding, no extra HBM passes.
    im1_r = im1.reshape(rows, cols)
    im2_r = im2.reshape(rows, cols)
    mask_r = mask.reshape(rows, cols)

    tile_spec = pl.BlockSpec((tr, tc), lambda i, j: (i, j))
    acc_spec = pl.BlockSpec((tr, _LANE), lambda i, j: (i, 0))  # resident across j

    cost = pl.CostEstimate(
        flops=5 * rows * cols,
        transcendentals=0,
        bytes_accessed=rows * cols * (sum(in_sizes) + out_size),
    )

    kernel = functools.partial(_masked_mse_kernel, cols=cols, tc=tc, ragged=ragged)

    li_r, num_r, den_r = pl.pallas_call(
        kernel,
        out_shape=(
            jax.ShapeDtypeStruct((rows, cols), out_dtype),      # loss_image (row view)
            jax.ShapeDtypeStruct((rows, _LANE), jnp.float32),   # per-row SSE slabs
            jax.ShapeDtypeStruct((rows, _LANE), jnp.float32),   # per-row mask-sum slabs
        ),
        grid_spec=pl.GridSpec(
            grid=(nr, nc),
            in_specs=[tile_spec, tile_spec, tile_spec],
            out_specs=(tile_spec, acc_spec, acc_spec),
        ),
        compiler_params=pltpu.CompilerParams(
            dimension_semantics=("parallel", "arbitrary"),
            vmem_limit_bytes=_VMEM_LIMIT,
        ),
        cost_estimate=cost,
    )(im1_r, im2_r, mask_r)

    # Tiny [rows, 128] epilogue: fold the k sublane-fill rows and 128 lanes
    # back into per-sample sums (trivial XLA work).
    num = num_r.reshape(b, k * _LANE).sum(axis=1)
    den = den_r.reshape(b, k * _LANE).sum(axis=1)
    loss = jnp.mean(num / den).astype(out_dtype)   # NaN on all-zero mask rows (matches PyTorch)
    loss_image = li_r.reshape(orig_shape)
    return loss, loss_image, den


@jax.custom_vjp
def calc_loss(im1, im2, mask):
    """Pallas equivalent of BaseTrainModule.calc_loss -> (loss, loss_image)."""
    loss, loss_image, _ = _calc_loss_fwd(im1, im2, mask)
    return loss, loss_image


def _calc_loss_vjp_fwd(im1, im2, mask):
    loss, loss_image, den = _calc_loss_fwd(im1, im2, mask)
    return (loss, loss_image), (im1, im2, mask, den)


def _calc_loss_vjp_bwd(res, cts):
    im1, im2, mask, den = res
    g_loss, g_li = cts
    b = im1.shape[0]
    bshape = (b,) + (1,) * (im1.ndim - 1)
    g = 2.0 * (im1.astype(jnp.float32) - im2.astype(jnp.float32)) * mask.astype(jnp.float32)
    scale = (g_loss.astype(jnp.float32) / (den * b)).reshape(bshape)
    d_im1 = g * (g_li.astype(jnp.float32) + scale)
    return (d_im1.astype(im1.dtype),
            (-d_im1).astype(im2.dtype),
            jnp.zeros_like(mask))          # mask is detached -> zero cotangent


calc_loss.defvjp(_calc_loss_vjp_fwd, _calc_loss_vjp_bwd)


def _reference(a, b_, m):
    av = a.reshape(a.shape[0], -1)
    bv = b_.reshape(b_.shape[0], -1)
    mv = m.reshape(m.shape[0], -1)
    li = (av - bv) ** 2 * mv
    return (li.sum(axis=1) / mv.sum(axis=1)).mean(), li.reshape(a.shape)


if __name__ == "__main__":
    key = jax.random.PRNGKey(0)
    k1, k2, k3 = jax.random.split(key, 3)

    # Aligned NCHW case.
    B, C, H, W = 2, 4, 16, 16
    im1 = jax.random.normal(k1, (B, C, H, W), dtype=jnp.float32)
    im2 = jax.random.normal(k2, (B, C, H, W), dtype=jnp.float32)
    mask = (jax.random.uniform(k3, (B, C, H, W)) > 0.3).astype(jnp.float32)

    loss, loss_image = calc_loss(im1, im2, mask)
    jax.block_until_ready((loss, loss_image))

    ref_loss, ref_li = _reference(im1, im2, mask)
    assert jnp.allclose(loss, ref_loss, rtol=1e-5, atol=1e-5)
    assert jnp.allclose(loss_image, ref_li, rtol=1e-5, atol=1e-5)

    # Ragged / unaligned shape exercises the in-kernel tail masking (no host pad).
    B2, D2 = 3, 719
    a2 = jax.random.normal(k1, (B2, D2), dtype=jnp.float32)
    b2 = jax.random.normal(k2, (B2, D2), dtype=jnp.float32)
    m2 = (jax.random.uniform(k3, (B2, D2)) > 0.5).astype(jnp.float32)
    l2, li2 = calc_loss(a2, b2, m2)
    jax.block_until_ready((l2, li2))
    rl2, rli2 = _reference(a2, b2, m2)
    assert jnp.allclose(l2, rl2, rtol=1e-5, atol=1e-5)
    assert jnp.allclose(li2, rli2, rtol=1e-5, atol=1e-5)

    # Custom-VJP smoke test (training path).
    g_im1 = jax.grad(lambda x: calc_loss(x, im2, mask)[0])(im1)
    den = mask.reshape(B, -1).sum(axis=1).reshape(B, 1, 1, 1)
    g_ref = 2.0 * (im1 - im2) * mask / (den * B)
    assert jnp.allclose(g_im1, g_ref, rtol=1e-5, atol=1e-5)

    print("KERNEL_OK")
</pallas_src>

<mosaic_0001>
module attributes {stable_mosaic.version = 11 : i64} {
  func.func @_masked_mse_kernel(%arg0: i32, %arg1: i32, %arg2: memref<8x128xf32, #tpu.memory_space<vmem>>, %arg3: memref<8x128xf32, #tpu.memory_space<vmem>>, %arg4: memref<8x128xf32, #tpu.memory_space<vmem>>, %arg5: memref<8x128xf32, #tpu.memory_space<vmem>>, %arg6: memref<8x128xf32, #tpu.memory_space<vmem>>, %arg7: memref<8x128xf32, #tpu.memory_space<vmem>>) attributes {dimension_semantics = [#tpu.dimension_semantics<parallel>, #tpu.dimension_semantics<arbitrary>], iteration_bounds = array<i64: 2, 1>, scalar_prefetch = 0 : i64, scratch_operands = 0 : i64, tpu.core_type = #tpu.core_type<tc>, window_params = [{transform_indices = @transform_0, window_bounds = array<i64: 8, 128>}, {transform_indices = @transform_1, window_bounds = array<i64: 8, 128>}, {transform_indices = @transform_2, window_bounds = array<i64: 8, 128>}, {transform_indices = @transform_3, window_bounds = array<i64: 8, 128>}, {transform_indices = @transform_4, window_bounds = array<i64: 8, 128>}, {transform_indices = @transform_5, window_bounds = array<i64: 8, 128>}]} {
    %c0_i32 = arith.constant 0 : i32
    %0 = arith.cmpi eq, %arg1, %c0_i32 : i32
    %1 = arith.extui %0 : i1 to i32
    %c0_i32_0 = arith.constant 0 : i32
    %2 = arith.cmpi ne, %1, %c0_i32_0 : i32
    scf.if %2 {
      %cst = arith.constant 0.000000e+00 : f32
      %16 = vector.broadcast %cst : f32 to vector<8x128xf32>
      %c0_16 = arith.constant 0 : index
      %c0_17 = arith.constant 0 : index
      %17 = vector.load %arg6[%c0_16, %c0_17] : memref<8x128xf32, #tpu.memory_space<vmem>>, vector<8x128xf32>
      tpu.vector_store %arg6[%c0_16, %c0_17], %16 {strides = array<i32>} : memref<8x128xf32, #tpu.memory_space<vmem>>, vector<8x128xf32>,
      %cst_18 = arith.constant 0.000000e+00 : f32
      %18 = vector.broadcast %cst_18 : f32 to vector<8x128xf32>
      %c0_19 = arith.constant 0 : index
      %c0_20 = arith.constant 0 : index
      %19 = vector.load %arg7[%c0_19, %c0_20] : memref<8x128xf32, #tpu.memory_space<vmem>>, vector<8x128xf32>
      tpu.vector_store %arg7[%c0_19, %c0_20], %18 {strides = array<i32>} : memref<8x128xf32, #tpu.memory_space<vmem>>, vector<8x128xf32>,
    } else {
    }
    %c0 = arith.constant 0 : index
    %c0_1 = arith.constant 0 : index
    %3 = vector.load %arg2[%c0, %c0_1] : memref<8x128xf32, #tpu.memory_space<vmem>>, vector<8x128xf32>
    %c0_2 = arith.constant 0 : index
    %c0_3 = arith.constant 0 : index
    %4 = vector.load %arg3[%c0_2, %c0_3] : memref<8x128xf32, #tpu.memory_space<vmem>>, vector<8x128xf32>
    %5 = arith.subf %3, %4 : vector<8x128xf32>
    %c0_4 = arith.constant 0 : index
    %c0_5 = arith.constant 0 : index
    %6 = vector.load %arg4[%c0_4, %c0_5] : memref<8x128xf32, #tpu.memory_space<vmem>>, vector<8x128xf32>
    %7 = arith.mulf %5, %5 : vector<8x128xf32>
    %8 = arith.mulf %7, %6 : vector<8x128xf32>
    %c0_6 = arith.constant 0 : index
    %c0_7 = arith.constant 0 : index
    %9 = vector.load %arg5[%c0_6, %c0_7] : memref<8x128xf32, #tpu.memory_space<vmem>>, vector<8x128xf32>
    tpu.vector_store %arg5[%c0_6, %c0_7], %8 {strides = array<i32>} : memref<8x128xf32, #tpu.memory_space<vmem>>, vector<8x128xf32>,
    %c0_8 = arith.constant 0 : index
    %c0_9 = arith.constant 0 : index
    %10 = vector.load %arg6[%c0_8, %c0_9] : memref<8x128xf32, #tpu.memory_space<vmem>>, vector<8x128xf32>
    %11 = arith.addf %10, %8 : vector<8x128xf32>
    %c0_10 = arith.constant 0 : index
    %c0_11 = arith.constant 0 : index
    %12 = vector.load %arg6[%c0_10, %c0_11] : memref<8x128xf32, #tpu.memory_space<vmem>>, vector<8x128xf32>
    tpu.vector_store %arg6[%c0_10, %c0_11], %11 {strides = array<i32>} : memref<8x128xf32, #tpu.memory_space<vmem>>, vector<8x128xf32>,
    %c0_12 = arith.constant 0 : index
    %c0_13 = arith.constant 0 : index
    %13 = vector.load %arg7[%c0_12, %c0_13] : memref<8x128xf32, #tpu.memory_space<vmem>>, vector<8x128xf32>
    %14 = arith.addf %13, %6 : vector<8x128xf32>
    %c0_14 = arith.constant 0 : index
    %c0_15 = arith.constant 0 : index
    %15 = vector.load %arg7[%c0_14, %c0_15] : memref<8x128xf32, #tpu.memory_space<vmem>>, vector<8x128xf32>
    tpu.vector_store %arg7[%c0_14, %c0_15], %14 {strides = array<i32>} : memref<8x128xf32, #tpu.memory_space<vmem>>, vector<8x128xf32>,
    return
  }
  func.func @transform_0(%arg0: i32, %arg1: i32) -> (i32, i32) {
    %c0_i32 = arith.constant 0 : i32
    return %arg0, %arg1 : i32, i32
  }
  func.func @transform_1(%arg0: i32, %arg1: i32) -> (i32, i32) {
    %c0_i32 = arith.constant 0 : i32
    return %arg0, %arg1 : i32, i32
  }
  func.func @transform_2(%arg0: i32, %arg1: i32) -> (i32, i32) {
    %c0_i32 = arith.constant 0 : i32
    return %arg0, %arg1 : i32, i32
  }
  func.func @transform_3(%arg0: i32, %arg1: i32) -> (i32, i32) {
    %c0_i32 = arith.constant 0 : i32
    return %arg0, %arg1 : i32, i32
  }
  func.func @transform_4(%arg0: i32, %arg1: i32) -> (i32, i32) {
    %c0_i32 = arith.constant 0 : i32
    %c0_i32_0 = arith.constant 0 : i32
    return %arg0, %c0_i32 : i32, i32
  }
  func.func @transform_5(%arg0: i32, %arg1: i32) -> (i32, i32) {
    %c0_i32 = arith.constant 0 : i32
    %c0_i32_0 = arith.constant 0 : i32
    return %arg0, %c0_i32 : i32, i32
  }
}

</mosaic_0001>

<llo_original>
// kernel: tpu_custom_call.1
$region0: #{tpu_custom_call.1}
  #allocation0 [shape = 'u32[]', space=smem, size = 0x4, offset = 0x4, fixed_abs, tag = 'smem constant byte address 0x4 - core index']
  #allocation1 [shape = 'u32[144,128]{1,0:T(1,128)}', space=vmem, size = 0x12000, scoped, tag = 'internal scratch']
  %s0 = inlined_call_operand.hbm [shape: f32[16,128], index: 0, kind: input, shape index: {}]
  %s1 = inlined_call_operand.hbm [shape: f32[16,128], index: 1, kind: input, shape index: {}]
  %s2 = inlined_call_operand.hbm [shape: f32[16,128], index: 2, kind: input, shape index: {}]
  %s3 = inlined_call_operand.hbm [shape: f32[16,128], index: 3, kind: output, shape index: {0}]
  %s4 = inlined_call_operand.hbm [shape: f32[16,128], index: 4, kind: output, shape index: {1}]
  %s5 = inlined_call_operand.hbm [shape: f32[16,128], index: 5, kind: output, shape index: {2}]
  %6 = xla_tuple %s3, %s4, %s5
  %s7 = sld [smem:[#allocation0]]
  $region77: #{tpu_custom_call.1} parent=0
    _
  %s9 = ssub.s32 1, %s7
  %s10 = scalar_select 0, %s9, %s7
  $region1: #{tpu_custom_call.1} parent=0
    #allocation2 [shape = 'u8[8192]{0}', space=vmem, size = 0x2000, scoped, tag = 'input window, operand 0']
    #allocation3 [shape = 's32[2]{0}', space=sflag, size = 0x8, scoped, tag = 'scoped memory for tpu_custom_call.1']
    #allocation4 [shape = 's32[2]{0}', space=sflag, size = 0x8, scoped, tag = 'scoped memory for tpu_custom_call.1']
    #allocation5 [shape = 'u8[8192]{0}', space=vmem, size = 0x2000, scoped, tag = 'input window, operand 1']
    #allocation6 [shape = 's32[2]{0}', space=sflag, size = 0x8, scoped, tag = 'scoped memory for tpu_custom_call.1']
    #allocation7 [shape = 'u8[8192]{0}', space=vmem, size = 0x2000, scoped, tag = 'input window, operand 2']
    #allocation8 [shape = 'u8[8192]{0}', space=vmem, size = 0x2000, scoped, tag = 'output window, operand 0']
    #allocation9 [shape = 'u8[8192]{0}', space=vmem, size = 0x2000, scoped, tag = 'output window, operand 1']
    #allocation10 [shape = 's32[2]{0}', space=sflag, size = 0x8, scoped, tag = 'scoped memory for tpu_custom_call.1']
    #allocation11 [shape = 'u8[8192]{0}', space=vmem, size = 0x2000, scoped, tag = 'output window, operand 2']
    %11 = vsyncpa [#allocation3], 0
    %s12 = scalar_lea.sflag [#allocation3], 1
    %13 = vsyncpa %s12, 0
    %14 = vsyncpa [#allocation6], 0
    %s15 = scalar_lea.sflag [#allocation6], 1
    %16 = vsyncpa %s15, 0
    %17 = vsyncpa [#allocation4], 0
    %s18 = scalar_lea.sflag [#allocation4], 1
    %19 = vsyncpa %s18, 0
    %20 = vsyncpa [#allocation10], 0
    %s21 = scalar_lea.sflag [#allocation10], 1
    %22 = vsyncpa %s21, 0
    loop: start=0, step=1, limit=4
    $region2: #{tpu_custom_call.1} parent=1 // loop_pre_header
      _
    $region3: #{tpu_custom_call.1} parent=1 // loop_header
      %s24 = sphi 0, %s28
      %p25 = scmp.ge.s32.totalorder %s24, 4
      %s31 = sphi 0, %s43
      %s32 = sphi 0, %s39
      %s33 = sphi 0, %s31
      %s34 = sphi 0, %s32
      %s35 = sphi 0, %s33
      %s36 = sphi 0, %s34
      %s48 = sphi 0, %s50
      %s51 = sphi 0, %s48
      %s52 = sphi 0, %s51
      %s68 = sphi 0, %s52
      %s76 = sphi 0, %s78
      %s79 = sphi 0, %s76
      %s80 = sphi 0, %s79
      %s96 = sphi 0, %s80
      %s104 = sphi 0, %s106
      %s107 = sphi 0, %s104
      %s108 = sphi 0, %s107
      %s124 = sphi 0, %s108
      %s132 = sphi 0, %s134
      %s135 = sphi 0, %s132
      %s136 = sphi 0, %s135
      %s152 = sphi 0, %s136
      %s158 = sphi 0, %s160
      %s161 = sphi 0, %s158
      %s162 = sphi 0, %s161
      %s178 = sphi 0, %s162
      %s184 = sphi 0, %s186
      %s187 = sphi 0, %s184
      %s188 = sphi 0, %s187
      %s204 = sphi 0, %s188
    $region4: #{tpu_custom_call.1} parent=1 // loop_header_branch
      %27 = sbr.rel (%p25) target = $region8
    $region5: #{tpu_custom_call.1} parent=1 // loop_body
      %s29 = ssub.s32 %s24, 1
      %s30 = ssub.s32 %s24, 2
      %s37 = sadd.s32 1, %s32
      %p38 = scmp.ge.s32.totalorder %s37, 1
      %s39 = scalar_select %p38, 0, %s37
      %s40 = sadd.s32 1, %s31
      %s41 = scalar_select %p38, %s40, %s31
      %p42 = scmp.ge.s32.totalorder %s41, 2
      %s43 = scalar_select %p42, 0, %s41
      %s44 = ssub.s32 %s31, %s43
      %s45 = ssub.s32 %s32, %s39
      %s46 = sor.u32 %s44, %s45
      %p47 = scmp.eq.s32.totalorder %s46, 0
      %s49 = sadd.s32 %s48, 1
      %s50 = scalar_select %p47, %s48, %s49
      %p53 = pneg %p47
      %p54 = scmp.eq.s32.totalorder %s24, 1
      %p55 = por %p53, %p54
      %p56 = scmp.ne.s32.totalorder %s48, %s51
      %p57 = scmp.eq.s32.totalorder %s24, 0
      %p58 = por %p56, %p57
      %p59 = scmp.ne.s32.totalorder %s48, %s51
      %p60 = scmp.eq.s32.totalorder %s29, 1
      %p61 = por %p59, %p60
      %p62 = scmp.ne.s32.totalorder %s51, %s52
      %p63 = scmp.eq.s32.totalorder %s29, 0
      %p64 = por %p62, %p63
      %p65 = scmp.ne.s32.totalorder %s51, %s52
      %p66 = scmp.eq.s32.totalorder %s30, 1
      %p67 = por %p65, %p66
      %p69 = scmp.ne.s32.totalorder %s52, %s68
      %p70 = scmp.eq.s32.totalorder %s30, 0
      %p71 = por %p69, %p70
      %s72 = ssub.s32 %s31, %s43
      %s73 = ssub.s32 %s32, %s39
      %s74 = sor.u32 %s72, %s73
      %p75 = scmp.eq.s32.totalorder %s74, 0
      %s77 = sadd.s32 %s76, 1
      %s78 = scalar_select %p75, %s76, %s77
      %p81 = pneg %p75
      %p82 = scmp.eq.s32.totalorder %s24, 1
      %p83 = por %p81, %p82
      %p84 = scmp.ne.s32.totalorder %s76, %s79
      %p85 = scmp.eq.s32.totalorder %s24, 0
      %p86 = por %p84, %p85
      %p87 = scmp.ne.s32.totalorder %s76, %s79
      %p88 = scmp.eq.s32.totalorder %s29, 1
      %p89 = por %p87, %p88
      %p90 = scmp.ne.s32.totalorder %s79, %s80
      %p91 = scmp.eq.s32.totalorder %s29, 0
      %p92 = por %p90, %p91
      %p93 = scmp.ne.s32.totalorder %s79, %s80
      %p94 = scmp.eq.s32.totalorder %s30, 1
      %p95 = por %p93, %p94
      %p97 = scmp.ne.s32.totalorder %s80, %s96
      %p98 = scmp.eq.s32.totalorder %s30, 0
      %p99 = por %p97, %p98
      %s100 = ssub.s32 %s31, %s43
      %s101 = ssub.s32 %s32, %s39
      %s102 = sor.u32 %s100, %s101
      %p103 = scmp.eq.s32.totalorder %s102, 0
      %s105 = sadd.s32 %s104, 1
      %s106 = scalar_select %p103, %s104, %s105
      %p109 = pneg %p103
      %p110 = scmp.eq.s32.totalorder %s24, 1
      %p111 = por %p109, %p110
      %p112 = scmp.ne.s32.totalorder %s104, %s107
      %p113 = scmp.eq.s32.totalorder %s24, 0
      %p114 = por %p112, %p113
      %p115 = scmp.ne.s32.totalorder %s104, %s107
      %p116 = scmp.eq.s32.totalorder %s29, 1
      %p117 = por %p115, %p116
      %p118 = scmp.ne.s32.totalorder %s107, %s108
      %p119 = scmp.eq.s32.totalorder %s29, 0
      %p120 = por %p118, %p119
      %p121 = scmp.ne.s32.totalorder %s107, %s108
      %p122 = scmp.eq.s32.totalorder %s30, 1
      %p123 = por %p121, %p122
      %p125 = scmp.ne.s32.totalorder %s108, %s124
      %p126 = scmp.eq.s32.totalorder %s30, 0
      %p127 = por %p125, %p126
      %s128 = ssub.s32 %s31, %s43
      %s129 = ssub.s32 %s32, %s39
      %s130 = sor.u32 %s128, %s129
      %p131 = scmp.eq.s32.totalorder %s130, 0
      %s133 = sadd.s32 %s132, 1
      %s134 = scalar_select %p131, %s132, %s133
      %p137 = pneg %p131
      %p138 = scmp.eq.s32.totalorder %s24, 1
      %p139 = por %p137, %p138
      %p140 = scmp.ne.s32.totalorder %s132, %s135
      %p141 = scmp.eq.s32.totalorder %s24, 0
      %p142 = por %p140, %p141
      %p143 = scmp.ne.s32.totalorder %s132, %s135
      %p144 = scmp.eq.s32.totalorder %s29, 1
      %p145 = por %p143, %p144
      %p146 = scmp.ne.s32.totalorder %s135, %s136
      %p147 = scmp.eq.s32.totalorder %s29, 0
      %p148 = por %p146, %p147
      %p149 = scmp.ne.s32.totalorder %s135, %s136
      %p150 = scmp.eq.s32.totalorder %s30, 1
      %p151 = por %p149, %p150
      %p153 = scmp.ne.s32.totalorder %s136, %s152
      %p154 = scmp.eq.s32.totalorder %s30, 0
      %p155 = por %p153, %p154
      %s156 = ssub.s32 %s31, %s43
      %p157 = scmp.eq.s32.totalorder %s156, 0
      %s159 = sadd.s32 %s158, 1
      %s160 = scalar_select %p157, %s158, %s159
      %p163 = pneg %p157
      %p164 = scmp.eq.s32.totalorder %s24, 1
      %p165 = por %p163, %p164
      %p166 = scmp.ne.s32.totalorder %s158, %s161
      %p167 = scmp.eq.s32.totalorder %s24, 0
      %p168 = por %p166, %p167
      %p169 = scmp.ne.s32.totalorder %s158, %s161
      %p170 = scmp.eq.s32.totalorder %s29, 1
      %p171 = por %p169, %p170
      %p172 = scmp.ne.s32.totalorder %s161, %s162
      %p173 = scmp.eq.s32.totalorder %s29, 0
      %p174 = por %p172, %p173
      %p175 = scmp.ne.s32.totalorder %s161, %s162
      %p176 = scmp.eq.s32.totalorder %s30, 1
      %p177 = por %p175, %p176
      %p179 = scmp.ne.s32.totalorder %s162, %s178
      %p180 = scmp.eq.s32.totalorder %s30, 0
      %p181 = por %p179, %p180
      %s182 = ssub.s32 %s31, %s43
      %p183 = scmp.eq.s32.totalorder %s182, 0
      %s185 = sadd.s32 %s184, 1
      %s186 = scalar_select %p183, %s184, %s185
      %p189 = pneg %p183
      %p190 = scmp.eq.s32.totalorder %s24, 1
      %p191 = por %p189, %p190
      %p192 = scmp.ne.s32.totalorder %s184, %s187
      %p193 = scmp.eq.s32.totalorder %s24, 0
      %p194 = por %p192, %p193
      %p195 = scmp.ne.s32.totalorder %s184, %s187
      %p196 = scmp.eq.s32.totalorder %s29, 1
      %p197 = por %p195, %p196
      %p198 = scmp.ne.s32.totalorder %s187, %s188
      %p199 = scmp.eq.s32.totalorder %s29, 0
      %p200 = por %p198, %p199
      %p201 = scmp.ne.s32.totalorder %s187, %s188
      %p202 = scmp.eq.s32.totalorder %s30, 1
      %p203 = por %p201, %p202
      %p205 = scmp.ne.s32.totalorder %s188, %s204
      %p206 = scmp.eq.s32.totalorder %s30, 0
      %p207 = por %p205, %p206
      %p208 = scmp.le.s32.totalorder 1, %s24
      %p209 = scmp.lt.s32.totalorder %s24, 3
      %p210 = pnand %p208, %p209
      %p211 = pneg %p210
      // Predicated region
      $region9: #{tpu_custom_call.1} parent=5 // pred_check
        _
      $region10: #{tpu_custom_call.1} parent=5 // pred_check_branch
        %213 = sbr.rel (%p210) target = $region12
      $region11: #{tpu_custom_call.1} parent=5 // pred_region
        %s214 = ssub.s32 %s24, 1
      $region12: #{tpu_custom_call.1} parent=5 // pred_fallthru
        _
      %p215 = scmp.lt.s32.totalorder %s24, 2
      // Predicated region
      $region13: #{tpu_custom_call.1} parent=5 // pred_check
        %p216 = pneg %p215
      $region14: #{tpu_custom_call.1} parent=5 // pred_check_branch
        %218 = sbr.rel (%p216) target = $region16
      $region15: #{tpu_custom_call.1} parent=5 // pred_region
        // Predicated region
        $region17: #{tpu_custom_call.1} parent=15 // pred_check
          %p219 = pneg %p58
        $region18: #{tpu_custom_call.1} parent=15 // pred_check_branch
          %221 = sbr.rel (%p219) target = $region20
        $region19: #{tpu_custom_call.1} parent=15 // pred_region
          %s222 = sand.u32 %s48, 1
          %s223 = scalar_lea.sflag [#allocation3], %s222
          %s224 = sand.u32 %s48, 1
          %s225 = smul.addr %s224, 8
          %s226 = scalar_lea.vmem [#allocation2], %s225
          %s228 = ssub.s32 128, 128
          %229 = vsyncadd %s223, %s228
          %s230 = sadd.s32 %s32, %s31
          %s231 = smul.addr %s230, 128
          %s232 = scalar_lea.hbm %s0, %s231
          %s234 = sshll.u32 %s226, 4
          %s235 = int_to_ptr.vmem [resolvable:$true] %s234
          %237 = dma.hbm_to_vmem [thread:$0]  %s232, 128, %s235, %s223
        $region20: #{tpu_custom_call.1} parent=15 // pred_fallthru
          _
        // Predicated region
        $region21: #{tpu_custom_call.1} parent=15 // pred_check
          %p238 = pneg %p86
        $region22: #{tpu_custom_call.1} parent=15 // pred_check_branch
          %240 = sbr.rel (%p238) target = $region24
        $region23: #{tpu_custom_call.1} parent=15 // pred_region
          %s241 = sand.u32 %s24, 1
          %s242 = scalar_lea.sflag [#allocation6], %s241
          %s243 = sand.u32 %s76, 1
          %s244 = smul.addr %s243, 8
          %s245 = scalar_lea.vmem [#allocation5], %s244
          %s247 = ssub.s32 128, 128
          %248 = vsyncadd %s242, %s247
          %s249 = sadd.s32 %s32, %s31
          %s250 = smul.addr %s249, 128
          %s251 = scalar_lea.hbm %s1, %s250
          %s253 = sshll.u32 %s245, 4
          %s254 = int_to_ptr.vmem [resolvable:$true] %s253
          %256 = dma.hbm_to_vmem [thread:$0]  %s251, 128, %s254, %s242
        $region24: #{tpu_custom_call.1} parent=15 // pred_fallthru
          _
        // Predicated region
        $region25: #{tpu_custom_call.1} parent=15 // pred_check
          %p257 = pneg %p114
        $region26: #{tpu_custom_call.1} parent=15 // pred_check_branch
          %259 = sbr.rel (%p257) target = $region28
        $region27: #{tpu_custom_call.1} parent=15 // pred_region
          %s260 = sand.u32 %s24, 1
          %s261 = scalar_lea.sflag [#allocation6], %s260
          %s262 = sand.u32 %s104, 1
          %s263 = smul.addr %s262, 8
          %s264 = scalar_lea.vmem [#allocation7], %s263
          %s266 = ssub.s32 128, 128
          %267 = vsyncadd %s261, %s266
          %s268 = sadd.s32 %s32, %s31
          %s269 = smul.addr %s268, 128
          %s270 = scalar_lea.hbm %s2, %s269
          %s272 = sshll.u32 %s264, 4
          %s273 = int_to_ptr.vmem [resolvable:$true] %s272
          %275 = dma.hbm_to_vmem [thread:$0]  %s270, 128, %s273, %s261
        $region28: #{tpu_custom_call.1} parent=15 // pred_fallthru
          _
      $region16: #{tpu_custom_call.1} parent=5 // pred_fallthru
        _
      %p276 = scmp.le.s32.totalorder 1, %s24
      %p277 = scmp.lt.s32.totalorder %s24, 3
      %p278 = pnand %p276, %p277
      %p279 = pneg %p278
      // Predicated region
      $region29: #{tpu_custom_call.1} parent=5 // pred_check
        _
      $region30: #{tpu_custom_call.1} parent=5 // pred_check_branch
        %281 = sbr.rel (%p278) target = $region32
      $region31: #{tpu_custom_call.1} parent=5 // pred_region
        %s282 = ssub.s32 %s24, 1
        %s283 = sand.u32 %s51, 1
        %s284 = scalar_lea.sflag [#allocation3], %s283
        %s285 = sand.u32 %s51, 1
        %s286 = smul.addr %s285, 8
        %s287 = scalar_lea.vmem [#allocation2], %s286
        // Predicated region
        $region33: #{tpu_custom_call.1} parent=31 // pred_check
          %p288 = pneg %p64
        $region34: #{tpu_custom_call.1} parent=31 // pred_check_branch
          %290 = sbr.rel (%p288) target = $region36
        $region35: #{tpu_custom_call.1} parent=31 // pred_region
          %291 = dma.done %s284, 128
        $region36: #{tpu_custom_call.1} parent=31 // pred_fallthru
          _
        %s292 = sand.u32 %s29, 1
        %s293 = scalar_lea.sflag [#allocation6], %s292
        %s294 = sand.u32 %s79, 1
        %s295 = smul.addr %s294, 8
        %s296 = scalar_lea.vmem [#allocation5], %s295
        // Predicated region
        $region37: #{tpu_custom_call.1} parent=31 // pred_check
          %p297 = pneg %p92
        $region38: #{tpu_custom_call.1} parent=31 // pred_check_branch
          %299 = sbr.rel (%p297) target = $region40
        $region39: #{tpu_custom_call.1} parent=31 // pred_region
          %300 = dma.done %s293, 128
        $region40: #{tpu_custom_call.1} parent=31 // pred_fallthru
          _
        %s301 = sand.u32 %s29, 1
        %s302 = scalar_lea.sflag [#allocation6], %s301
        %s303 = sand.u32 %s107, 1
        %s304 = smul.addr %s303, 8
        %s305 = scalar_lea.vmem [#allocation7], %s304
        // Predicated region
        $region41: #{tpu_custom_call.1} parent=31 // pred_check
          %p306 = pneg %p120
        $region42: #{tpu_custom_call.1} parent=31 // pred_check_branch
          %308 = sbr.rel (%p306) target = $region44
        $region43: #{tpu_custom_call.1} parent=31 // pred_region
          %309 = dma.done %s302, 128
        $region44: #{tpu_custom_call.1} parent=31 // pred_fallthru
          _
        %s310 = sand.u32 %s51, 1
        %s311 = scalar_lea.sflag [#allocation3], %s310
        %s312 = sand.u32 %s51, 1
        %s313 = smul.addr %s312, 8
        %s314 = scalar_lea.vmem [#allocation2], %s313
        %p315 = pneg %p64
        %p316 = pneg %p61
        %s317 = sand.u32 %s29, 1
        %s318 = scalar_lea.sflag [#allocation6], %s317
        %s319 = sand.u32 %s79, 1
        %s320 = smul.addr %s319, 8
        %s321 = scalar_lea.vmem [#allocation5], %s320
        %p322 = pneg %p92
        %p323 = pneg %p89
        %s324 = sand.u32 %s29, 1
        %s325 = scalar_lea.sflag [#allocation6], %s324
        %s326 = sand.u32 %s107, 1
        %s327 = smul.addr %s326, 8
        %s328 = scalar_lea.vmem [#allocation7], %s327
        %p329 = pneg %p120
        %p330 = pneg %p117
        %p331 = pneg %p148
        %p332 = pneg %p145
        %s333 = sand.u32 %s135, 1
        %s334 = scalar_lea.sflag [#allocation4], %s333
        %s335 = sand.u32 %s135, 1
        %s336 = smul.addr %s335, 8
        %s337 = scalar_lea.vmem [#allocation8], %s336
        %p338 = pneg %p174
        %p339 = pneg %p171
        %s340 = sand.u32 %s29, 1
        %s341 = scalar_lea.sflag [#allocation10], %s340
        %s342 = sand.u32 %s161, 1
        %s343 = smul.addr %s342, 8
        %s344 = scalar_lea.vmem [#allocation9], %s343
        %p345 = pneg %p200
        %p346 = pneg %p197
        %s347 = sand.u32 %s29, 1
        %s348 = scalar_lea.sflag [#allocation10], %s347
        %s349 = sand.u32 %s187, 1
        %s350 = smul.addr %s349, 8
        %s351 = scalar_lea.vmem [#allocation11], %s350
        %p352 = scmp.eq.s32.totalorder %s34, 0
        // Predicated region
        $region45: #{tpu_custom_call.1} parent=31 // pred_check
          %p353 = pneg %p352
        $region46: #{tpu_custom_call.1} parent=31 // pred_check_branch
          %355 = sbr.rel (%p353) target = $region48
        $region47: #{tpu_custom_call.1} parent=31 // pred_region
          %356 = vst [vmem:[%s344] sm:$0xff] 0.0
          %357 = vst [vmem:[%s351] sm:$0xff] 0.0
        $region48: #{tpu_custom_call.1} parent=31 // pred_fallthru
          _
        %v358 = vld [vmem:[%s287] sm:$0xff]
        %v359 = vld [vmem:[%s296] sm:$0xff]
        %v360 = vsub.f32 %v358, %v359
        %v361 = vld [vmem:[%s305] sm:$0xff]
        %v362 = vmul.f32 %v360, %v360
        %v363 = vmul.f32 %v362, %v361
        %364 = vst [vmem:[%s337] sm:$0xff] %v363
        %v365 = vld [vmem:[%s344] sm:$0xff]
        %v366 = vadd.f32 %v365, %v363
        %367 = vst [vmem:[%s344] sm:$0xff] %v366
        %v368 = vld [vmem:[%s351] sm:$0xff]
        %v369 = vadd.f32 %v368, %v361
        %370 = vst [vmem:[%s351] sm:$0xff] %v369
        %s371 = sand.u32 %s135, 1
        %s372 = scalar_lea.sflag [#allocation4], %s371
        %s373 = sand.u32 %s135, 1
        %s374 = smul.addr %s373, 8
        %s375 = scalar_lea.vmem [#allocation8], %s374
        %s376 = sand.u32 %s29, 1
        %s377 = scalar_lea.sflag [#allocation10], %s376
        %s378 = sand.u32 %s161, 1
        %s379 = smul.addr %s378, 8
        %s380 = scalar_lea.vmem [#allocation9], %s379
        %s381 = sand.u32 %s29, 1
        %s382 = scalar_lea.sflag [#allocation10], %s381
        %s383 = sand.u32 %s187, 1
        %s384 = smul.addr %s383, 8
        %s385 = scalar_lea.vmem [#allocation11], %s384
        // Predicated region
        $region49: #{tpu_custom_call.1} parent=31 // pred_check
          %p386 = pneg %p145
        $region50: #{tpu_custom_call.1} parent=31 // pred_check_branch
          %388 = sbr.rel (%p386) target = $region52
        $region51: #{tpu_custom_call.1} parent=31 // pred_region
          %s390 = ssub.s32 128, 128
          %391 = vsyncadd %s372, %s390
          %s392 = sadd.s32 %s34, %s33
          %s393 = smul.addr %s392, 128
          %s394 = scalar_lea.hbm %s3, %s393
          %s396 = sshll.u32 %s375, 4
          %s397 = int_to_ptr.vmem [resolvable:$true] %s396
          %399 = dma.vmem_to_hbm [thread:$0]  %s397, 128, %s394, %s372
        $region52: #{tpu_custom_call.1} parent=31 // pred_fallthru
          _
        // Predicated region
        $region53: #{tpu_custom_call.1} parent=31 // pred_check
          %p400 = pneg %p171
        $region54: #{tpu_custom_call.1} parent=31 // pred_check_branch
          %402 = sbr.rel (%p400) target = $region56
        $region55: #{tpu_custom_call.1} parent=31 // pred_region
          %s404 = ssub.s32 128, 128
          %405 = vsyncadd %s377, %s404
          %s406 = smul.addr %s33, 128
          %s407 = scalar_lea.hbm %s4, %s406
          %s409 = sshll.u32 %s380, 4
          %s410 = int_to_ptr.vmem [resolvable:$true] %s409
          %412 = dma.vmem_to_hbm [thread:$0]  %s410, 128, %s407, %s377
        $region56: #{tpu_custom_call.1} parent=31 // pred_fallthru
          _
        // Predicated region
        $region57: #{tpu_custom_call.1} parent=31 // pred_check
          %p413 = pneg %p197
        $region58: #{tpu_custom_call.1} parent=31 // pred_check_branch
          %415 = sbr.rel (%p413) target = $region60
        $region59: #{tpu_custom_call.1} parent=31 // pred_region
          %s417 = ssub.s32 128, 128
          %418 = vsyncadd %s382, %s417
          %s419 = smul.addr %s33, 128
          %s420 = scalar_lea.hbm %s5, %s419
          %s422 = sshll.u32 %s385, 4
          %s423 = int_to_ptr.vmem [resolvable:$true] %s422
          %425 = dma.vmem_to_hbm [thread:$0]  %s423, 128, %s420, %s382
        $region60: #{tpu_custom_call.1} parent=31 // pred_fallthru
          _
      $region32: #{tpu_custom_call.1} parent=5 // pred_fallthru
        _
      %p426 = scmp.le.s32.totalorder 2, %s24
      // Predicated region
      $region61: #{tpu_custom_call.1} parent=5 // pred_check
        %p427 = pneg %p426
      $region62: #{tpu_custom_call.1} parent=5 // pred_check_branch
        %429 = sbr.rel (%p427) target = $region64
      $region63: #{tpu_custom_call.1} parent=5 // pred_region
        %s430 = ssub.s32 %s24, 2
        // Predicated region
        $region65: #{tpu_custom_call.1} parent=63 // pred_check
          %p431 = pneg %p151
        $region66: #{tpu_custom_call.1} parent=63 // pred_check_branch
          %433 = sbr.rel (%p431) target = $region68
        $region67: #{tpu_custom_call.1} parent=63 // pred_region
          %s434 = sand.u32 %s136, 1
          %s435 = scalar_lea.sflag [#allocation4], %s434
          %s436 = sand.u32 %s136, 1
          %s437 = smul.addr %s436, 8
          %s438 = scalar_lea.vmem [#allocation8], %s437
          %439 = dma.done %s435, 128
        $region68: #{tpu_custom_call.1} parent=63 // pred_fallthru
          _
        // Predicated region
        $region69: #{tpu_custom_call.1} parent=63 // pred_check
          %p440 = pneg %p177
        $region70: #{tpu_custom_call.1} parent=63 // pred_check_branch
          %442 = sbr.rel (%p440) target = $region72
        $region71: #{tpu_custom_call.1} parent=63 // pred_region
          %s443 = sand.u32 %s30, 1
          %s444 = scalar_lea.sflag [#allocation10], %s443
          %s445 = sand.u32 %s162, 1
          %s446 = smul.addr %s445, 8
          %s447 = scalar_lea.vmem [#allocation9], %s446
          %448 = dma.done %s444, 128
        $region72: #{tpu_custom_call.1} parent=63 // pred_fallthru
          _
        // Predicated region
        $region73: #{tpu_custom_call.1} parent=63 // pred_check
          %p449 = pneg %p203
        $region74: #{tpu_custom_call.1} parent=63 // pred_check_branch
          %451 = sbr.rel (%p449) target = $region76
        $region75: #{tpu_custom_call.1} parent=63 // pred_region
          %s452 = sand.u32 %s30, 1
          %s453 = scalar_lea.sflag [#allocation10], %s452
          %s454 = sand.u32 %s188, 1
          %s455 = smul.addr %s454, 8
          %s456 = scalar_lea.vmem [#allocation11], %s455
          %457 = dma.done %s453, 128
        $region76: #{tpu_custom_call.1} parent=63 // pred_fallthru
          _
      $region64: #{tpu_custom_call.1} parent=5 // pred_fallthru
        _
    $region6: #{tpu_custom_call.1} parent=1 // loop_footer
      %s28 = sadd.s32 1, %s24
    $region7: #{tpu_custom_call.1} parent=1 // loop_footer_branch
      %23 = sbr.rel target = $region3
    $region8: #{tpu_custom_call.1} parent=1 // loop_exit
      _
    %458 = vsyncpa [#allocation3], 1
    %s459 = scalar_lea.sflag [#allocation3], 1
    %460 = vsyncpa %s459, 1
    %461 = vsyncpa [#allocation6], 1
    %s462 = scalar_lea.sflag [#allocation6], 1
    %463 = vsyncpa %s462, 1
    %464 = vsyncpa [#allocation4], 1
    %s465 = scalar_lea.sflag [#allocation4], 1
    %466 = vsyncpa %s465, 1
    %467 = vsyncpa [#allocation10], 1
    %s468 = scalar_lea.sflag [#allocation10], 1
    %469 = vsyncpa %s468, 1

</llo_original>
